<compile_context>
chip_gen: v6e
topology: v6e:2x2x1
jax: 0.10.0
libtpu: 0.0.40
codegen_flags: <defaults>
</compile_context>

<pallas_src>
import functools

import jax
import jax.numpy as jnp
from jax.experimental import pallas as pl
from jax.experimental.pallas import tpu as pltpu


def _calayer_kernel(x_ref, wd_ref, bd_ref, wu_ref, bu_ref, o_ref, *, inv_hw):
    # x_ref : (1, C, HW)   one batch element, spatial flattened on the lane axis
    # wd_ref: (Cr, C), bd_ref: (Cr, 1)    1x1 conv  C  -> C // reduction
    # wu_ref: (C, Cr), bu_ref: (C, 1)     1x1 conv  C // reduction -> C
    # o_ref : (1, C, HW)
    x = x_ref[0].astype(jnp.float32)                          # (C, HW)

    # ---- global average pool over the spatial (lane) axis ----
    pooled = jnp.sum(x, axis=-1, keepdims=True) * inv_hw      # (C, 1)
    # Broadcast to a full 128-lane tile so the two tiny matmuls below use
    # standard, unmasked MXU shapes (all 128 columns are identical).
    pooled_b = jnp.broadcast_to(pooled, (pooled.shape[0], 128))  # (C, 128)

    # ---- 1x1 conv C -> Cr, ReLU ----
    z = jnp.maximum(
        jnp.dot(wd_ref[...], pooled_b, preferred_element_type=jnp.float32)
        + bd_ref[...],
        0.0)                                                  # (Cr, 128)

    # ---- 1x1 conv Cr -> C, Sigmoid ----
    s = jax.nn.sigmoid(
        jnp.dot(wu_ref[...], z, preferred_element_type=jnp.float32)
        + bu_ref[...])                                        # (C, 128)
    scale = s[:, 0:1]                                         # (C, 1)

    # ---- channel-wise rescale of the input ----
    o_ref[0] = (x * scale).astype(o_ref.dtype)


def calayer_forward(x_nchw, params):
    """x_nchw: (N, C, H, W). Returns (N, C, H, W) = x * sigmoid(conv_du(avg_pool(x)))."""
    N, C, H, W = x_nchw.shape
    wd, bd, wu, bu = params
    Cr = wd.shape[0]
    HW = H * W

    # Metadata-only reshape: NCHW is already contiguous as (N, C, H*W).
    x3 = x_nchw.reshape(N, C, HW)

    kernel = functools.partial(_calayer_kernel, inv_hw=1.0 / float(HW))
    const = lambda shape: pl.BlockSpec(shape, lambda n: (0,) * len(shape))

    out3 = pl.pallas_call(
        kernel,
        out_shape=jax.ShapeDtypeStruct((N, C, HW), x_nchw.dtype),
        grid=(N,),
        in_specs=[
            pl.BlockSpec((1, C, HW), lambda n: (n, 0, 0)),  # x (one image)
            const((Cr, C)),   # wd
            const((Cr, 1)),   # bd
            const((C, Cr)),   # wu
            const((C, 1)),    # bu
        ],
        out_specs=pl.BlockSpec((1, C, HW), lambda n: (n, 0, 0)),
        compiler_params=pltpu.CompilerParams(
            dimension_semantics=("parallel",)),
    )(x3, wd, bd, wu, bu)

    return out3.reshape(N, C, H, W)


def init_params(key, channel, reduction=4):
    """Deterministic init with the module's shapes.

    conv_du[0]: Conv2d(C, C//r, 1) -> wd (C//r, C), bd (C//r, 1)
    conv_du[2]: Conv2d(C//r, C, 1) -> wu (C, C//r), bu (C, 1)
    Weights stored matmul-ready as (out, in); biases as column vectors so they
    broadcast along the 128-lane axis inside the kernel.
    """
    cr = channel // reduction
    k1, k2, k3, k4 = jax.random.split(key, 4)

    def kaiming(k, shape, fan_in):
        std = (2.0 / fan_in) ** 0.5
        return jax.random.normal(k, shape, jnp.float32) * std

    wd = kaiming(k1, (cr, channel), channel)
    bd = 0.1 * jax.random.normal(k2, (cr, 1), jnp.float32)
    wu = kaiming(k3, (channel, cr), cr)
    bu = 0.1 * jax.random.normal(k4, (channel, 1), jnp.float32)
    return wd, bd, wu, bu


def _reference(x_nchw, params):
    """Pure-JAX NCHW reference matching the PyTorch CALayer.forward."""
    wd, bd, wu, bu = params
    y = jnp.mean(x_nchw, axis=(2, 3))                     # (N, C)
    z = jnp.maximum(y @ wd.T + bd[:, 0], 0.0)             # (N, Cr)
    s = jax.nn.sigmoid(z @ wu.T + bu[:, 0])               # (N, C)
    return x_nchw * s[:, :, None, None]


if __name__ == "__main__":
    N, C, H, W = 2, 16, 16, 16          # channels divisible by reduction=4
    key = jax.random.PRNGKey(0)
    kx, kp = jax.random.split(key)
    x = jax.random.normal(kx, (N, C, H, W), jnp.float32)
    params = init_params(kp, C, reduction=4)

    out = jax.block_until_ready(calayer_forward(x, params))
    ref = _reference(x, params)
    assert out.shape == x.shape and out.dtype == x.dtype
    assert jnp.allclose(out, ref, atol=1e-4, rtol=1e-4), \
        float(jnp.max(jnp.abs(out - ref)))
    print("KERNEL_OK")
</pallas_src>

<mosaic_0001>
module attributes {stable_mosaic.version = 11 : i64} {
  func.func @_calayer_kernel(%arg0: i32, %arg1: memref<1x16x256xf32, #tpu.memory_space<vmem>>, %arg2: memref<4x16xf32, #tpu.memory_space<vmem>>, %arg3: memref<4x1xf32, #tpu.memory_space<vmem>>, %arg4: memref<16x4xf32, #tpu.memory_space<vmem>>, %arg5: memref<16x1xf32, #tpu.memory_space<vmem>>, %arg6: memref<1x16x256xf32, #tpu.memory_space<vmem>>) attributes {dimension_semantics = [#tpu.dimension_semantics<parallel>], iteration_bounds = array<i64: 2>, scalar_prefetch = 0 : i64, scratch_operands = 0 : i64, tpu.core_type = #tpu.core_type<tc>, window_params = [{transform_indices = @transform_0, window_bounds = array<i64: 1, 16, 256>}, {pipeline_mode = #tpu.pipeline_mode<synchronous>, transform_indices = @transform_1, window_bounds = array<i64: 4, 16>}, {pipeline_mode = #tpu.pipeline_mode<synchronous>, transform_indices = @transform_2, window_bounds = array<i64: 4, 1>}, {pipeline_mode = #tpu.pipeline_mode<synchronous>, transform_indices = @transform_3, window_bounds = array<i64: 16, 4>}, {pipeline_mode = #tpu.pipeline_mode<synchronous>, transform_indices = @transform_4, window_bounds = array<i64: 16, 1>}, {transform_indices = @transform_5, window_bounds = array<i64: 1, 16, 256>}]} {
    %c0 = arith.constant 0 : index
    %c0_0 = arith.constant 0 : index
    %c0_1 = arith.constant 0 : index
    %0 = vector.load %arg1[%c0, %c0_0, %c0_1] : memref<1x16x256xf32, #tpu.memory_space<vmem>>, vector<1x16x256xf32>
    %1 = vector.shape_cast %0 : vector<1x16x256xf32> to vector<16x256xf32>
    %cst = arith.constant dense<0.000000e+00> : vector<16xf32>
    %2 = vector.multi_reduction <add>, %1, %cst [1] : vector<16x256xf32> to vector<16xf32>
    %3 = vector.shape_cast %2 : vector<16xf32> to vector<16x1xf32>
    %cst_2 = arith.constant 3.906250e-03 : f32
    %4 = vector.broadcast %cst_2 : f32 to vector<16x1xf32>
    %5 = arith.mulf %3, %4 : vector<16x1xf32>
    %6 = vector.shape_cast %5 : vector<16x1xf32> to vector<16x1xf32>
    %7 = vector.broadcast %6 : vector<16x1xf32> to vector<16x128xf32>
    %c0_3 = arith.constant 0 : index
    %c0_4 = arith.constant 0 : index
    %8 = vector.load %arg2[%c0_3, %c0_4] : memref<4x16xf32, #tpu.memory_space<vmem>>, vector<4x16xf32>
    %cst_5 = arith.constant dense<0.000000e+00> : vector<4x128xf32>
    %9 = tpu.matmul %8, %7, %cst_5 {dimension_numbers = #tpu.dot_dimension_numbers<[1], [0], [0], [1], [0, 0, 1, 1], [], []>} : vector<4x16xf32>, vector<16x128xf32>, vector<4x128xf32> -> vector<4x128xf32>
    %c0_6 = arith.constant 0 : index
    %c0_7 = arith.constant 0 : index
    %10 = vector.load %arg3[%c0_6, %c0_7] : memref<4x1xf32, #tpu.memory_space<vmem>>, vector<4x1xf32>
    %11 = vector.broadcast %10 : vector<4x1xf32> to vector<4x128xf32>
    %12 = arith.addf %9, %11 : vector<4x128xf32>
    %cst_8 = arith.constant 0.000000e+00 : f32
    %13 = vector.broadcast %cst_8 : f32 to vector<4x128xf32>
    %14 = arith.maximumf %12, %13 : vector<4x128xf32>
    %c0_9 = arith.constant 0 : index
    %c0_10 = arith.constant 0 : index
    %15 = vector.load %arg4[%c0_9, %c0_10] : memref<16x4xf32, #tpu.memory_space<vmem>>, vector<16x4xf32>
    %cst_11 = arith.constant dense<0.000000e+00> : vector<16x128xf32>
    %16 = tpu.matmul %15, %14, %cst_11 {dimension_numbers = #tpu.dot_dimension_numbers<[1], [0], [0], [1], [0, 0, 1, 1], [], []>} : vector<16x4xf32>, vector<4x128xf32>, vector<16x128xf32> -> vector<16x128xf32>
    %c0_12 = arith.constant 0 : index
    %c0_13 = arith.constant 0 : index
    %17 = vector.load %arg5[%c0_12, %c0_13] : memref<16x1xf32, #tpu.memory_space<vmem>>, vector<16x1xf32>
    %18 = vector.broadcast %17 : vector<16x1xf32> to vector<16x128xf32>
    %19 = arith.addf %16, %18 : vector<16x128xf32>
    %20 = arith.negf %19 : vector<16x128xf32>
    %21 = math.exp %20 : vector<16x128xf32>
    %cst_14 = arith.constant 1.000000e+00 : f32
    %22 = vector.broadcast %cst_14 : f32 to vector<16x128xf32>
    %23 = arith.addf %22, %21 : vector<16x128xf32>
    %24 = arith.divf %22, %23 : vector<16x128xf32>
    %25 = vector.extract_strided_slice %24 {offsets = [0, 0], sizes = [16, 1], strides = [1, 1]} : vector<16x128xf32> to vector<16x1xf32>
    %26 = vector.broadcast %25 : vector<16x1xf32> to vector<16x256xf32>
    %27 = arith.mulf %1, %26 : vector<16x256xf32>
    %c0_15 = arith.constant 0 : index
    %c0_16 = arith.constant 0 : index
    %c0_17 = arith.constant 0 : index
    %28 = vector.load %arg6[%c0_15, %c0_16, %c0_17] : memref<1x16x256xf32, #tpu.memory_space<vmem>>, vector<1x16x256xf32>
    %29 = vector.shape_cast %28 : vector<1x16x256xf32> to vector<16x256xf32>
    %30 = vector.shape_cast %27 : vector<16x256xf32> to vector<1x16x256xf32>
    tpu.vector_store %arg6[%c0_15, %c0_16, %c0_17], %30 {strides = array<i32>} : memref<1x16x256xf32, #tpu.memory_space<vmem>>, vector<1x16x256xf32>,
    return
  }
  func.func @transform_0(%arg0: i32) -> (i32, i32, i32) {
    %c0_i32 = arith.constant 0 : i32
    %c0_i32_0 = arith.constant 0 : i32
    %c0_i32_1 = arith.constant 0 : i32
    return %arg0, %c0_i32, %c0_i32_0 : i32, i32, i32
  }
  func.func @transform_1(%arg0: i32) -> (i32, i32) {
    %c0_i32 = arith.constant 0 : i32
    %c0_i32_0 = arith.constant 0 : i32
    %c0_i32_1 = arith.constant 0 : i32
    return %c0_i32, %c0_i32_0 : i32, i32
  }
  func.func @transform_2(%arg0: i32) -> (i32, i32) {
    %c0_i32 = arith.constant 0 : i32
    %c0_i32_0 = arith.constant 0 : i32
    %c0_i32_1 = arith.constant 0 : i32
    return %c0_i32, %c0_i32_0 : i32, i32
  }
  func.func @transform_3(%arg0: i32) -> (i32, i32) {
    %c0_i32 = arith.constant 0 : i32
    %c0_i32_0 = arith.constant 0 : i32
    %c0_i32_1 = arith.constant 0 : i32
    return %c0_i32, %c0_i32_0 : i32, i32
  }
  func.func @transform_4(%arg0: i32) -> (i32, i32) {
    %c0_i32 = arith.constant 0 : i32
    %c0_i32_0 = arith.constant 0 : i32
    %c0_i32_1 = arith.constant 0 : i32
    return %c0_i32, %c0_i32_0 : i32, i32
  }
  func.func @transform_5(%arg0: i32) -> (i32, i32, i32) {
    %c0_i32 = arith.constant 0 : i32
    %c0_i32_0 = arith.constant 0 : i32
    %c0_i32_1 = arith.constant 0 : i32
    return %arg0, %c0_i32, %c0_i32_0 : i32, i32, i32
  }
}

</mosaic_0001>

<llo_original>
// kernel: tpu_custom_call.1
$region0: #{tpu_custom_call.1}
  #allocation0 [shape = 'u32[]', space=smem, size = 0x4, offset = 0x4, fixed_abs, tag = 'smem constant byte address 0x4 - core index']
  #allocation1 [shape = 'u32[144,128]{1,0:T(1,128)}', space=vmem, size = 0x12000, scoped, tag = 'internal scratch']
  %s0 = inlined_call_operand.hbm [shape: f32[2,16,256], index: 0, kind: input, shape index: {}]
  %s1 = inlined_call_operand.vmem [shape: f32[4,16], index: 1, kind: input, shape index: {}]
  %s2 = inlined_call_operand.vmem [shape: f32[4,1], index: 2, kind: input, shape index: {}]
  %s3 = inlined_call_operand.vmem [shape: f32[16,4], index: 3, kind: input, shape index: {}]
  %s4 = inlined_call_operand.vmem [shape: f32[16,1], index: 4, kind: input, shape index: {}]
  %s5 = inlined_call_operand.hbm [shape: f32[2,16,256], index: 5, kind: output, shape index: {}]
  %s6 = sld [smem:[#allocation0]]
  $region57: #{tpu_custom_call.1} parent=0
    _
  %s8 = ssub.s32 1, %s6
  %s9 = scalar_select 0, %s8, %s6
  $region1: #{tpu_custom_call.1} parent=0
    #allocation2 [shape = 'u8[32768]{0}', space=vmem, size = 0x8000, scoped, tag = 'input window, operand 0']
    #allocation3 [shape = 's32[2]{0}', space=sflag, size = 0x8, scoped, tag = 'scoped memory for tpu_custom_call.1']
    #allocation4 [shape = 's32[2]{0}', space=sflag, size = 0x8, scoped, tag = 'scoped memory for tpu_custom_call.1']
    #allocation5 [shape = 'u8[32768]{0}', space=vmem, size = 0x8000, scoped, tag = 'output window, operand 0']
    %10 = vsyncpa [#allocation3], 0
    %s11 = scalar_lea.sflag [#allocation3], 1
    %12 = vsyncpa %s11, 0
    %13 = vsyncpa [#allocation4], 0
    %s14 = scalar_lea.sflag [#allocation4], 1
    %15 = vsyncpa %s14, 0
    loop: start=0, step=1, limit=4
    $region2: #{tpu_custom_call.1} parent=1 // loop_pre_header
      _
    $region3: #{tpu_custom_call.1} parent=1 // loop_header
      %s17 = sphi 0, %s21
      %p18 = scmp.ge.s32.totalorder %s17, 4
      %s27 = sphi 0, %s29
      %s30 = sphi 0, %s27
      %s31 = sphi 0, %s30
      %s47 = sphi 0, %s31
      %s51 = sphi 0, %s51
      %s53 = sphi 0, %s51
      %s54 = sphi 0, %s53
      %s68 = sphi 0, %s54
      %s72 = sphi 0, %s72
      %s74 = sphi 0, %s72
      %s75 = sphi 0, %s74
      %s89 = sphi 0, %s75
      %s93 = sphi 0, %s93
      %s95 = sphi 0, %s93
      %s96 = sphi 0, %s95
      %s110 = sphi 0, %s96
      %s114 = sphi 0, %s114
      %s116 = sphi 0, %s114
      %s117 = sphi 0, %s116
      %s131 = sphi 0, %s117
      %s137 = sphi 0, %s139
      %s140 = sphi 0, %s137
      %s141 = sphi 0, %s140
      %s157 = sphi 0, %s141
    $region4: #{tpu_custom_call.1} parent=1 // loop_header_branch
      %20 = sbr.rel (%p18) target = $region8
    $region5: #{tpu_custom_call.1} parent=1 // loop_body
      %s22 = ssub.s32 %s17, 1
      %s23 = ssub.s32 %s17, 2
      %s24 = sadd.s32 %s17, 1
      %s25 = ssub.s32 %s17, %s24
      %p26 = scmp.eq.s32.totalorder %s25, 0
      %s28 = sadd.s32 %s27, 1
      %s29 = scalar_select %p26, %s27, %s28
      %p32 = pneg %p26
      %p33 = scmp.eq.s32.totalorder %s17, 1
      %p34 = por %p32, %p33
      %p35 = scmp.ne.s32.totalorder %s27, %s30
      %p36 = scmp.eq.s32.totalorder %s17, 0
      %p37 = por %p35, %p36
      %p38 = scmp.ne.s32.totalorder %s27, %s30
      %p39 = scmp.eq.s32.totalorder %s22, 1
      %p40 = por %p38, %p39
      %p41 = scmp.ne.s32.totalorder %s30, %s31
      %p42 = scmp.eq.s32.totalorder %s22, 0
      %p43 = por %p41, %p42
      %p44 = scmp.ne.s32.totalorder %s30, %s31
      %p45 = scmp.eq.s32.totalorder %s23, 1
      %p46 = por %p44, %p45
      %p48 = scmp.ne.s32.totalorder %s31, %s47
      %p49 = scmp.eq.s32.totalorder %s23, 0
      %p50 = por %p48, %p49
      %s52 = sadd.s32 %s51, 1
      %p55 = scmp.eq.s32.totalorder %s17, 1
      %p56 = scmp.ne.s32.totalorder %s51, %s53
      %p57 = scmp.eq.s32.totalorder %s17, 0
      %p58 = por %p56, %p57
      %p59 = scmp.ne.s32.totalorder %s51, %s53
      %p60 = scmp.eq.s32.totalorder %s22, 1
      %p61 = por %p59, %p60
      %p62 = scmp.ne.s32.totalorder %s53, %s54
      %p63 = scmp.eq.s32.totalorder %s22, 0
      %p64 = por %p62, %p63
      %p65 = scmp.ne.s32.totalorder %s53, %s54
      %p66 = scmp.eq.s32.totalorder %s23, 1
      %p67 = por %p65, %p66
      %p69 = scmp.ne.s32.totalorder %s54, %s68
      %p70 = scmp.eq.s32.totalorder %s23, 0
      %p71 = por %p69, %p70
      %s73 = sadd.s32 %s72, 1
      %p76 = scmp.eq.s32.totalorder %s17, 1
      %p77 = scmp.ne.s32.totalorder %s72, %s74
      %p78 = scmp.eq.s32.totalorder %s17, 0
      %p79 = por %p77, %p78
      %p80 = scmp.ne.s32.totalorder %s72, %s74
      %p81 = scmp.eq.s32.totalorder %s22, 1
      %p82 = por %p80, %p81
      %p83 = scmp.ne.s32.totalorder %s74, %s75
      %p84 = scmp.eq.s32.totalorder %s22, 0
      %p85 = por %p83, %p84
      %p86 = scmp.ne.s32.totalorder %s74, %s75
      %p87 = scmp.eq.s32.totalorder %s23, 1
      %p88 = por %p86, %p87
      %p90 = scmp.ne.s32.totalorder %s75, %s89
      %p91 = scmp.eq.s32.totalorder %s23, 0
      %p92 = por %p90, %p91
      %s94 = sadd.s32 %s93, 1
      %p97 = scmp.eq.s32.totalorder %s17, 1
      %p98 = scmp.ne.s32.totalorder %s93, %s95
      %p99 = scmp.eq.s32.totalorder %s17, 0
      %p100 = por %p98, %p99
      %p101 = scmp.ne.s32.totalorder %s93, %s95
      %p102 = scmp.eq.s32.totalorder %s22, 1
      %p103 = por %p101, %p102
      %p104 = scmp.ne.s32.totalorder %s95, %s96
      %p105 = scmp.eq.s32.totalorder %s22, 0
      %p106 = por %p104, %p105
      %p107 = scmp.ne.s32.totalorder %s95, %s96
      %p108 = scmp.eq.s32.totalorder %s23, 1
      %p109 = por %p107, %p108
      %p111 = scmp.ne.s32.totalorder %s96, %s110
      %p112 = scmp.eq.s32.totalorder %s23, 0
      %p113 = por %p111, %p112
      %s115 = sadd.s32 %s114, 1
      %p118 = scmp.eq.s32.totalorder %s17, 1
      %p119 = scmp.ne.s32.totalorder %s114, %s116
      %p120 = scmp.eq.s32.totalorder %s17, 0
      %p121 = por %p119, %p120
      %p122 = scmp.ne.s32.totalorder %s114, %s116
      %p123 = scmp.eq.s32.totalorder %s22, 1
      %p124 = por %p122, %p123
      %p125 = scmp.ne.s32.totalorder %s116, %s117
      %p126 = scmp.eq.s32.totalorder %s22, 0
      %p127 = por %p125, %p126
      %p128 = scmp.ne.s32.totalorder %s116, %s117
      %p129 = scmp.eq.s32.totalorder %s23, 1
      %p130 = por %p128, %p129
      %p132 = scmp.ne.s32.totalorder %s117, %s131
      %p133 = scmp.eq.s32.totalorder %s23, 0
      %p134 = por %p132, %p133
      %s135 = ssub.s32 %s17, %s24
      %p136 = scmp.eq.s32.totalorder %s135, 0
      %s138 = sadd.s32 %s137, 1
      %s139 = scalar_select %p136, %s137, %s138
      %p142 = pneg %p136
      %p143 = scmp.eq.s32.totalorder %s17, 1
      %p144 = por %p142, %p143
      %p145 = scmp.ne.s32.totalorder %s137, %s140
      %p146 = scmp.eq.s32.totalorder %s17, 0
      %p147 = por %p145, %p146
      %p148 = scmp.ne.s32.totalorder %s137, %s140
      %p149 = scmp.eq.s32.totalorder %s22, 1
      %p150 = por %p148, %p149
      %p151 = scmp.ne.s32.totalorder %s140, %s141
      %p152 = scmp.eq.s32.totalorder %s22, 0
      %p153 = por %p151, %p152
      %p154 = scmp.ne.s32.totalorder %s140, %s141
      %p155 = scmp.eq.s32.totalorder %s23, 1
      %p156 = por %p154, %p155
      %p158 = scmp.ne.s32.totalorder %s141, %s157
      %p159 = scmp.eq.s32.totalorder %s23, 0
      %p160 = por %p158, %p159
      %p161 = scmp.le.s32.totalorder 1, %s17
      %p162 = scmp.lt.s32.totalorder %s17, 3
      %p163 = pnand %p161, %p162
      %p164 = pneg %p163
      // Predicated region
      $region9: #{tpu_custom_call.1} parent=5 // pred_check
        _
      $region10: #{tpu_custom_call.1} parent=5 // pred_check_branch
        %166 = sbr.rel (%p163) target = $region12
      $region11: #{tpu_custom_call.1} parent=5 // pred_region
        %s167 = ssub.s32 %s17, 1
        // Predicated region
        $region13: #{tpu_custom_call.1} parent=11 // pred_check
          %p168 = pneg %p64
        $region14: #{tpu_custom_call.1} parent=11 // pred_check_branch
          %170 = sbr.rel (%p168) target = $region16
        $region15: #{tpu_custom_call.1} parent=11 // pred_region
          _
        $region16: #{tpu_custom_call.1} parent=11 // pred_fallthru
          _
        // Predicated region
        $region17: #{tpu_custom_call.1} parent=11 // pred_check
          %p171 = pneg %p85
        $region18: #{tpu_custom_call.1} parent=11 // pred_check_branch
          %173 = sbr.rel (%p171) target = $region20
        $region19: #{tpu_custom_call.1} parent=11 // pred_region
          _
        $region20: #{tpu_custom_call.1} parent=11 // pred_fallthru
          _
        // Predicated region
        $region21: #{tpu_custom_call.1} parent=11 // pred_check
          %p174 = pneg %p106
        $region22: #{tpu_custom_call.1} parent=11 // pred_check_branch
          %176 = sbr.rel (%p174) target = $region24
        $region23: #{tpu_custom_call.1} parent=11 // pred_region
          _
        $region24: #{tpu_custom_call.1} parent=11 // pred_fallthru
          _
        // Predicated region
        $region25: #{tpu_custom_call.1} parent=11 // pred_check
          %p177 = pneg %p127
        $region26: #{tpu_custom_call.1} parent=11 // pred_check_branch
          %179 = sbr.rel (%p177) target = $region28
        $region27: #{tpu_custom_call.1} parent=11 // pred_region
          _
        $region28: #{tpu_custom_call.1} parent=11 // pred_fallthru
          _
      $region12: #{tpu_custom_call.1} parent=5 // pred_fallthru
        _
      %p180 = scmp.lt.s32.totalorder %s17, 2
      // Predicated region
      $region29: #{tpu_custom_call.1} parent=5 // pred_check
        %p181 = pneg %p180
      $region30: #{tpu_custom_call.1} parent=5 // pred_check_branch
        %183 = sbr.rel (%p181) target = $region32
      $region31: #{tpu_custom_call.1} parent=5 // pred_region
        // Predicated region
        $region33: #{tpu_custom_call.1} parent=31 // pred_check
          %p184 = pneg %p37
        $region34: #{tpu_custom_call.1} parent=31 // pred_check_branch
          %186 = sbr.rel (%p184) target = $region36
        $region35: #{tpu_custom_call.1} parent=31 // pred_region
          %s187 = sand.u32 %s27, 1
          %s188 = scalar_lea.sflag [#allocation3], %s187
          %s189 = sand.u32 %s27, 1
          %s190 = smul.addr %s189, 32
          %s191 = scalar_lea.vmem [#allocation2], %s190
          %s193 = ssub.s32 512, 512
          %194 = vsyncadd %s188, %s193
          %s195 = smul.addr %s17, 4
          %s196 = smul.addr %s195, 128
          %s197 = scalar_lea.hbm %s0, %s196
          %s198 = sshll.u32 %s191, 4
          %s199 = int_to_ptr.vmem [resolvable:$true] %s198
          %204 = dma.hbm_to_vmem [thread:$0]  %s197, 512, %s199, %s188, 256, 256, 16
        $region36: #{tpu_custom_call.1} parent=31 // pred_fallthru
          _
      $region32: #{tpu_custom_call.1} parent=5 // pred_fallthru
        _
      %p205 = scmp.le.s32.totalorder 1, %s17
      %p206 = scmp.lt.s32.totalorder %s17, 3
      %p207 = pnand %p205, %p206
      %p208 = pneg %p207
      // Predicated region
      $region37: #{tpu_custom_call.1} parent=5 // pred_check
        _
      $region38: #{tpu_custom_call.1} parent=5 // pred_check_branch
        %210 = sbr.rel (%p207) target = $region40
      $region39: #{tpu_custom_call.1} parent=5 // pred_region
        %s211 = ssub.s32 %s17, 1
        %s212 = sand.u32 %s30, 1
        %s213 = scalar_lea.sflag [#allocation3], %s212
        %s214 = sand.u32 %s30, 1
        %s215 = smul.addr %s214, 32
        %s216 = scalar_lea.vmem [#allocation2], %s215
        // Predicated region
        $region41: #{tpu_custom_call.1} parent=39 // pred_check
          %p217 = pneg %p43
        $region42: #{tpu_custom_call.1} parent=39 // pred_check_branch
          %219 = sbr.rel (%p217) target = $region44
        $region43: #{tpu_custom_call.1} parent=39 // pred_region
          %220 = dma.done %s213, 512
        $region44: #{tpu_custom_call.1} parent=39 // pred_fallthru
          _
        %s221 = sand.u32 %s30, 1
        %s222 = scalar_lea.sflag [#allocation3], %s221
        %s223 = sand.u32 %s30, 1
        %s224 = smul.addr %s223, 32
        %s225 = scalar_lea.vmem [#allocation2], %s224
        %p226 = pneg %p43
        %p227 = pneg %p40
        %p228 = pneg %p64
        %p229 = pneg %p61
        %p230 = pneg %p85
        %p231 = pneg %p82
        %p232 = pneg %p106
        %p233 = pneg %p103
        %p234 = pneg %p127
        %p235 = pneg %p124
        %p236 = pneg %p153
        %p237 = pneg %p150
        %s238 = sand.u32 %s140, 1
        %s239 = scalar_lea.sflag [#allocation4], %s238
        %s240 = sand.u32 %s140, 1
        %s241 = smul.addr %s240, 32
        %s242 = scalar_lea.vmem [#allocation5], %s241
        %v243 = vld [vmem:[%s216] sm:$0xff]
        %v244 = vld [vmem:[%s216 + $0x8] sm:$0xff]
        %v245 = vld [vmem:[%s216 + $0x10] sm:$0xff]
        %v246 = vld [vmem:[%s216 + $0x18] sm:$0xff]
        %v247 = vadd.f32 %v243, %v244
        %248 = vadd.xlane.f32.xlu0 %v247
        %v249 = vpop.xlane.xlu0 %248
        %v250 = vadd.f32 %v245, %v246
        %251 = vadd.xlane.f32.xlu0 %v250
        %v252 = vpop.xlane.xlu0 %251
        %v253 = vmul.f32 %v249, 0.00390625
        %v254 = vmul.f32 %v252, 0.00390625
        %v255 = vld [vmem:[%s1] sm:$0xf]
        %v256 = vld [vmem:[%s2] sm:$0xf]
        %258 = vset.pattern.permute.xlu0 0
        %259 = vperm.xlu0 %258, %v256
        %v260 = vpop.permute.xlu0 %259
        %vm262 = vcmask 130048
        %v264 = vsel %vm262, %v255, 0
        %266 = vmatprep.subr.mxu0 0.0
        %267 = vmatpush1.msra.mxu0 0.0
        %268 = vmatprep.subr.mxu0 0.0
        %269 = vmatpush1.msra.mxu0 0.0
        %270 = vmatprep.subr.mxu0 0.0
        %271 = vmatpush1.msra.mxu0 0.0
        %272 = vmatprep.subr.mxu0 0.0
        %273 = vmatpush1.msra.mxu0 0.0
        %274 = vmatprep.subr.mxu0 0.0
        %275 = vmatpush1.msra.mxu0 0.0
        %276 = vmatprep.subr.mxu0 0.0
        %277 = vmatpush1.msra.mxu0 0.0
        %278 = vmatprep.subr.mxu0 0.0
        %279 = vmatpush1.msra.mxu0 0.0
        %280 = vmatprep.subr.mxu0 0.0
        %281 = vmatpush1.msra.mxu0 0.0
        %282 = vmatprep.subr.mxu0 0.0
        %283 = vmatpush1.msra.mxu0 0.0
        %284 = vmatprep.subr.mxu0 0.0
        %285 = vmatpush1.msra.mxu0 0.0
        %286 = vmatprep.subr.mxu0 0.0
        %287 = vmatpush1.msra.mxu0 0.0
        %288 = vmatprep.subr.mxu0 0.0
        %289 = vmatpush1.msra.mxu0 0.0
        %290 = vmatprep.subr.mxu0 0.0
        %291 = vmatpush1.msra.mxu0 0.0
        %292 = vmatprep.subr.mxu0 0.0
        %293 = vmatpush1.msra.mxu0 0.0
        %294 = vmatprep.subr.mxu0 0.0
        %295 = vmatpush1.msra.mxu0 %v254
        %296 = vmatprep.subr.mxu0 0.0
        %297 = vmatpush1.msra.mxu0 %v253
        %298 = vmatprep.subr.mxu0 0.0
        %299 = vmatpush2.msra.mxu0 0.0
        %300 = vmatprep.subr.mxu0 0.0
        %301 = vmatpush2.msra.mxu0 0.0
        %302 = vmatprep.subr.mxu0 0.0
        %303 = vmatpush2.msra.mxu0 0.0
        %304 = vmatprep.subr.mxu0 0.0
        %305 = vmatpush2.msra.mxu0 0.0
        %306 = vmatprep.subr.mxu0 0.0
        %307 = vmatpush2.msra.mxu0 0.0
        %308 = vmatprep.subr.mxu0 0.0
        %309 = vmatpush2.msra.mxu0 0.0
        %310 = vmatprep.subr.mxu0 0.0
        %311 = vmatpush2.msra.mxu0 0.0
        %312 = vmatprep.subr.mxu0 0.0
        %313 = vmatpush2.msra.mxu0 0.0
        %314 = vmatprep.subr.mxu0 0.0
        %315 = vmatpush2.msra.mxu0 0.0
        %316 = vmatprep.subr.mxu0 0.0
        %317 = vmatpush2.msra.mxu0 0.0
        %318 = vmatprep.subr.mxu0 0.0
        %319 = vmatpush2.msra.mxu0 0.0
        %320 = vmatprep.subr.mxu0 0.0
        %321 = vmatpush2.msra.mxu0 0.0
        %322 = vmatprep.subr.mxu0 0.0
        %323 = vmatpush2.msra.mxu0 0.0
        %324 = vmatprep.subr.mxu0 0.0
        %325 = vmatpush2.msra.mxu0 0.0
        %326 = vmatprep.subr.mxu0 0.0
        %327 = vmatpush2.msra.mxu0 0.0
        %328 = vmatprep.subr.mxu0 0.0
        %329 = vmatpush2.msra.mxu0 0.0
        %330 = vmatprep.mubr.f32.mxu0 0.0
        %331 = vmatmul.mubr.f32.gmra.mxu0 %v264
        %v332 = vpop.f32.mrf.mxu0
        %v333 = vadd.f32 %v260, %v332
        %v334 = vpop.f32.mrf.mxu0
        %335 = vdwg.mxu0
        %v336 = vmax.f32 %v333, 0.0
        %v337 = vld [vmem:[%s3] sm:$0xff]
        %v338 = vld [vmem:[%s3 + $0x8] sm:$0xff]
        %v339 = vld [vmem:[%s4] sm:$0xff]
        %v340 = vld [vmem:[%s4 + $0x8] sm:$0xff]
        %342 = vset.pattern.permute.xlu0 0
        %343 = vperm.xlu0 %342, %v339
        %v344 = vpop.permute.xlu0 %343
        %347 = vset.pattern.permute.xlu0 0
        %348 = vperm.xlu0 %347, %v340
        %v349 = vpop.permute.xlu0 %348
        %vm351 = vcmask 31744
        %v353 = vsel %vm351, %v337, 0
        %v356 = vsel %vm351, %v338, 0
        %vm358 = vcmask 1043456
        %v360 = vsel %vm358, %v336, 0
        %362 = vmatprep.subr.mxu0 0.0
        %363 = vmatpush1.msra.mxu0 0.0
        %364 = vmatprep.subr.mxu0 0.0
        %365 = vmatpush1.msra.mxu0 0.0
        %366 = vmatprep.subr.mxu0 0.0
        %367 = vmatpush1.msra.mxu0 0.0
        %368 = vmatprep.subr.mxu0 0.0
        %369 = vmatpush1.msra.mxu0 0.0
        %370 = vmatprep.subr.mxu0 0.0
        %371 = vmatpush1.msra.mxu0 0.0
        %372 = vmatprep.subr.mxu0 0.0
        %373 = vmatpush1.msra.mxu0 0.0
        %374 = vmatprep.subr.mxu0 0.0
        %375 = vmatpush1.msra.mxu0 0.0
        %376 = vmatprep.subr.mxu0 0.0
        %377 = vmatpush1.msra.mxu0 0.0
        %378 = vmatprep.subr.mxu0 0.0
        %379 = vmatpush1.msra.mxu0 0.0
        %380 = vmatprep.subr.mxu0 0.0
        %381 = vmatpush1.msra.mxu0 0.0
        %382 = vmatprep.subr.mxu0 0.0
        %383 = vmatpush1.msra.mxu0 0.0
        %384 = vmatprep.subr.mxu0 0.0
        %385 = vmatpush1.msra.mxu0 0.0
        %386 = vmatprep.subr.mxu0 0.0
        %387 = vmatpush1.msra.mxu0 0.0
        %388 = vmatprep.subr.mxu0 0.0
        %389 = vmatpush1.msra.mxu0 0.0
        %390 = vmatprep.subr.mxu0 0.0
        %391 = vmatpush1.msra.mxu0 0.0
        %392 = vmatprep.subr.mxu0 0.0
        %393 = vmatpush1.msra.mxu0 %v360
        %394 = vmatprep.subr.mxu0 0.0
        %395 = vmatpush2.msra.mxu0 0.0
        %396 = vmatprep.subr.mxu0 0.0
        %397 = vmatpush2.msra.mxu0 0.0
        %398 = vmatprep.subr.mxu0 0.0
        %399 = vmatpush2.msra.mxu0 0.0
        %400 = vmatprep.subr.mxu0 0.0
        %401 = vmatpush2.msra.mxu0 0.0
        %402 = vmatprep.subr.mxu0 0.0
        %403 = vmatpush2.msra.mxu0 0.0
        %404 = vmatprep.subr.mxu0 0.0
        %405 = vmatpush2.msra.mxu0 0.0
        %406 = vmatprep.subr.mxu0 0.0
        %407 = vmatpush2.msra.mxu0 0.0
        %408 = vmatprep.subr.mxu0 0.0
        %409 = vmatpush2.msra.mxu0 0.0
        %410 = vmatprep.subr.mxu0 0.0
        %411 = vmatpush2.msra.mxu0 0.0
        %412 = vmatprep.subr.mxu0 0.0
        %413 = vmatpush2.msra.mxu0 0.0
        %414 = vmatprep.subr.mxu0 0.0
        %415 = vmatpush2.msra.mxu0 0.0
        %416 = vmatprep.subr.mxu0 0.0
        %417 = vmatpush2.msra.mxu0 0.0
        %418 = vmatprep.subr.mxu0 0.0
        %419 = vmatpush2.msra.mxu0 0.0
        %420 = vmatprep.subr.mxu0 0.0
        %421 = vmatpush2.msra.mxu0 0.0
        %422 = vmatprep.subr.mxu0 0.0
        %423 = vmatpush2.msra.mxu0 0.0
        %424 = vmatprep.subr.mxu0 0.0
        %425 = vmatpush2.msra.mxu0 0.0
        %426 = vmatprep.mubr.f32.mxu0 0.0
        %427 = vmatmul.mubr.f32.gmra.mxu0 %v353
        %v428 = vpop.f32.mrf.mxu0
        %v429 = vadd.f32 %v344, %v428
        %v430 = vpop.f32.mrf.mxu0
        %431 = vmatprep.mubr.f32.mxu0 0.0
        %432 = vmatmul.mubr.f32.gmra.mxu0 %v356
        %v433 = vpop.f32.mrf.mxu0
        %v434 = vadd.f32 %v349, %v433
        %v435 = vpop.f32.mrf.mxu0
        %436 = vdwg.mxu0
        %v437 = vxor.u32 %v429, 2147483648
        %v438 = vxor.u32 %v434, 2147483648
        %v439 = vmul.f32 %v437, 1.442695
        %v440 = vpow.pop %v439
        %v441 = vmul.f32 %v438, 1.442695
        %v442 = vpow.pop %v441
        %v443 = vadd.f32 %v440, 1.0
        %v444 = vadd.f32 %v442, 1.0
        %v445 = vrcp.pop %v443
        %v446 = vmul.f32 1.0, %v445
        %v447 = vrcp.pop %v444
        %v448 = vmul.f32 1.0, %v447
        %450 = vset.pattern.permute.xlu0 0
        %451 = vperm.xlu0 %450, %v446
        %v452 = vpop.permute.xlu0 %451
        %455 = vset.pattern.permute.xlu0 0
        %456 = vperm.xlu0 %455, %v448
        %v457 = vpop.permute.xlu0 %456
        %v459 = vmul.f32 %v243, %v452
        %v460 = vmul.f32 %v244, %v452
        %v461 = vmul.f32 %v245, %v457
        %v462 = vmul.f32 %v246, %v457
        %463 = vst [vmem:[%s242] sm:$0xff] %v459
        %464 = vst [vmem:[%s242 + $0x8] sm:$0xff] %v460
        %465 = vst [vmem:[%s242 + $0x10] sm:$0xff] %v461
        %466 = vst [vmem:[%s242 + $0x18] sm:$0xff] %v462
        %s467 = sand.u32 %s140, 1
        %s468 = scalar_lea.sflag [#allocation4], %s467
        %s469 = sand.u32 %s140, 1
        %s470 = smul.addr %s469, 32
        %s471 = scalar_lea.vmem [#allocation5], %s470
        // Predicated region
        $region45: #{tpu_custom_call.1} parent=39 // pred_check
          %p472 = pneg %p150
        $region46: #{tpu_custom_call.1} parent=39 // pred_check_branch
          %474 = sbr.rel (%p472) target = $region48
        $region47: #{tpu_custom_call.1} parent=39 // pred_region
          %s476 = ssub.s32 512, 512
          %477 = vsyncadd %s468, %s476
          %s478 = smul.addr %s22, 4
          %s479 = smul.addr %s478, 128
          %s480 = scalar_lea.hbm %s5, %s479
          %s481 = sshll.u32 %s471, 4
          %s482 = int_to_ptr.vmem [resolvable:$true] %s481
          %487 = dma.vmem_to_hbm [thread:$0]  %s482, 512, %s480, %s468, 256, 256, 16
        $region48: #{tpu_custom_call.1} parent=39 // pred_fallthru
          _
      $region40: #{tpu_custom_call.1} parent=5 // pred_fallthru
        _
      %p488 = scmp.le.s32.totalorder 2, %s17
      // Predicated region
      $region49: #{tpu_custom_call.1} parent=5 // pred_check
        %p489 = pneg %p488
      $region50: #{tpu_custom_call.1} parent=5 // pred_check_branch
        %491 = sbr.rel (%p489) target = $region52
      $region51: #{tpu_custom_call.1} parent=5 // pred_region
        %s492 = ssub.s32 %s17, 2
        // Predicated region
        $region53: #{tpu_custom_call.1} parent=51 // pred_check
          %p493 = pneg %p156
        $region54: #{tpu_custom_call.1} parent=51 // pred_check_branch
          %495 = sbr.rel (%p493) target = $region56
        $region55: #{tpu_custom_call.1} parent=51 // pred_region
          %s496 = sand.u32 %s141, 1
          %s497 = scalar_lea.sflag [#allocation4], %s496
          %s498 = sand.u32 %s141, 1
          %s499 = smul.addr %s498, 32
          %s500 = scalar_lea.vmem [#allocation5], %s499
          %501 = dma.done %s497, 512
        $region56: #{tpu_custom_call.1} parent=51 // pred_fallthru
          _
      $region52: #{tpu_custom_call.1} parent=5 // pred_fallthru
        _
    $region6: #{tpu_custom_call.1} parent=1 // loop_footer
      %s21 = sadd.s32 1, %s17
    $region7: #{tpu_custom_call.1} parent=1 // loop_footer_branch
      %16 = sbr.rel target = $region3
    $region8: #{tpu_custom_call.1} parent=1 // loop_exit
      _
    %502 = vsyncpa [#allocation3], 1
    %s503 = scalar_lea.sflag [#allocation3], 1
    %504 = vsyncpa %s503, 1
    %505 = vsyncpa [#allocation4], 1
    %s506 = scalar_lea.sflag [#allocation4], 1
    %507 = vsyncpa %s506, 1

</llo_original>
